<compile_context>
chip_gen: v5e
topology: v5e:2x2
jax: 0.10.0
libtpu: 0.0.40
codegen_flags: <defaults>
</compile_context>

<pallas_src>
import jax
import jax.numpy as jnp
from jax.experimental import pallas as pl
from jax.experimental.pallas import tpu as pltpu


_MiB = 1024 * 1024
_VMEM_LIMIT_BYTES = 32 * _MiB       # safe scoped-VMEM budget on v5e/v6e/v7x
_TARGET_BLOCK_BYTES = 4 * _MiB      # per pipeline buffer (2x in + 2x out double-buffered)
_FUSED_MAX_IMAGE_BYTES = 7 * _MiB   # above this, fall back to the two-pass path


def _pick_block_b(b, per_image_bytes, target_bytes):
    """Largest batch block with block_b*per_image_bytes <= target, dividing b,
    and keeping at least 2 grid steps (so v7x's two TensorCores both work)."""
    bb = max(1, min(b, target_bytes // max(per_image_bytes, 1)))
    if b >= 2:
        bb = max(1, min(bb, b // 2))
    while b % bb:
        bb -= 1
    return bb


# --------------------------- fused (single-pass) ---------------------------

def _se_fused_kernel(x_ref, w1_ref, w2_ref, o_ref):
    """x_ref/o_ref: (block_b, C, HW) -- NCHW-native, HW in the lane dim.
    w1_ref: (C, Cr), w2_ref: (Cr, C) -- VMEM-resident across the grid."""
    x = x_ref[...]                                           # native dtype
    inv_hw = 1.0 / x.shape[2]
    # Squeeze: per-channel mean over the spatial (lane) axis, f32 accumulate.
    y = jnp.sum(x.astype(jnp.float32), axis=2) * inv_hw      # (block_b, C)
    # Excitation: FC -> ReLU -> FC -> Sigmoid (tiny, hidden under DMA).
    h = jnp.maximum(
        jnp.dot(y, w1_ref[...], preferred_element_type=jnp.float32), 0.0)
    s = jax.nn.sigmoid(
        jnp.dot(h, w2_ref[...], preferred_element_type=jnp.float32))
    # Scale: broadcast the per-channel gate over HW, in the native dtype.
    o_ref[...] = x * s.astype(x.dtype)[:, :, None]


# ---------------------------- two-pass fallback -----------------------------

def _se_pool_excite_kernel(x_ref, w1_ref, w2_ref, s_ref):
    """x_ref: (block_b, C, HW); s_ref: (block_b, C, 1) f32 gate."""
    x = x_ref[...]
    inv_hw = 1.0 / x.shape[2]
    y = jnp.sum(x.astype(jnp.float32), axis=2) * inv_hw
    h = jnp.maximum(
        jnp.dot(y, w1_ref[...], preferred_element_type=jnp.float32), 0.0)
    s = jax.nn.sigmoid(
        jnp.dot(h, w2_ref[...], preferred_element_type=jnp.float32))
    s_ref[...] = s[:, :, None]


def _se_scale_kernel(x_ref, s_ref, o_ref):
    """x_ref/o_ref: (block_b, C, block_hw); s_ref: (block_b, C, 1)."""
    x = x_ref[...]
    o_ref[...] = x * s_ref[...].astype(x.dtype)


# --------------------------------- wrapper ---------------------------------

def se_layer(x_nchw, w1, w2, *,
             target_block_bytes=_TARGET_BLOCK_BYTES,
             vmem_limit_bytes=_VMEM_LIMIT_BYTES,
             force_two_pass=False,
             hw_block=512):
    """SE forward matching the PyTorch module.

    x_nchw : (B, C, H, W)
    w1     : (C, C//r)    (torch fc[0].weight.T)
    w2     : (C//r, C)    (torch fc[2].weight.T)
    """
    b, c, h, w = x_nchw.shape
    hw = h * w
    # NCHW-native: this reshape is a free view (no transposes, no extra HBM passes).
    x = x_nchw.reshape(b, c, hw)
    itemsize = x.dtype.itemsize
    per_image_bytes = c * hw * itemsize

    fused = (not force_two_pass) and per_image_bytes <= _FUSED_MAX_IMAGE_BYTES

    if fused:
        block_b = _pick_block_b(b, per_image_bytes, target_block_bytes)
        grid_b = b // block_b
        cost = pl.CostEstimate(
            flops=int(2 * b * c * hw + 4 * b * c * w1.shape[1]),
            transcendentals=int(b * c),
            bytes_accessed=int(2 * x.size * itemsize
                               + w1.size * w1.dtype.itemsize
                               + w2.size * w2.dtype.itemsize))
        out = pl.pallas_call(
            _se_fused_kernel,
            out_shape=jax.ShapeDtypeStruct((b, c, hw), x.dtype),
            grid_spec=pltpu.PrefetchScalarGridSpec(
                num_scalar_prefetch=0,
                grid=(grid_b,),
                in_specs=[
                    # Multi-image slab per grid step, pipelined over the batch.
                    pl.BlockSpec((block_b, c, hw), lambda i: (i, 0, 0)),
                    # Tiny FC weights: constant block index -> VMEM-resident.
                    pl.BlockSpec(w1.shape, lambda i: (0, 0)),
                    pl.BlockSpec(w2.shape, lambda i: (0, 0)),
                ],
                out_specs=pl.BlockSpec((block_b, c, hw), lambda i: (i, 0, 0)),
            ),
            compiler_params=pltpu.CompilerParams(
                dimension_semantics=("parallel",),
                vmem_limit_bytes=vmem_limit_bytes),
            cost_estimate=cost,
        )(x, w1, w2)
        return out.reshape(b, c, h, w)

    # ---- two-pass path for large per-image footprints (esp. v7x 64 MiB) ----
    # Pass 1: pool + excite -> per-channel gate s of shape (B, C, 1), f32.
    block_b1 = _pick_block_b(b, per_image_bytes, 2 * target_block_bytes)
    grid_b1 = b // block_b1
    s = pl.pallas_call(
        _se_pool_excite_kernel,
        out_shape=jax.ShapeDtypeStruct((b, c, 1), jnp.float32),
        grid_spec=pltpu.PrefetchScalarGridSpec(
            num_scalar_prefetch=0,
            grid=(grid_b1,),
            in_specs=[
                pl.BlockSpec((block_b1, c, hw), lambda i: (i, 0, 0)),
                pl.BlockSpec(w1.shape, lambda i: (0, 0)),
                pl.BlockSpec(w2.shape, lambda i: (0, 0)),
            ],
            out_specs=pl.BlockSpec((block_b1, c, 1), lambda i: (i, 0, 0)),
        ),
        compiler_params=pltpu.CompilerParams(
            dimension_semantics=("parallel",),
            vmem_limit_bytes=vmem_limit_bytes),
    )(x, w1, w2)

    # Pass 2: elementwise scale, freely tiled over HW in lane-aligned chunks.
    if hw <= hw_block:
        block_hw = hw                       # full dim -> exempt from 128-alignment
    else:
        block_hw = max(128, (hw_block // 128) * 128)
    grid_hw = pl.cdiv(hw, block_hw)
    block_b2 = _pick_block_b(b, c * block_hw * itemsize, target_block_bytes)
    grid_b2 = b // block_b2
    out = pl.pallas_call(
        _se_scale_kernel,
        out_shape=jax.ShapeDtypeStruct((b, c, hw), x.dtype),
        grid_spec=pltpu.PrefetchScalarGridSpec(
            num_scalar_prefetch=0,
            grid=(grid_b2, grid_hw),
            in_specs=[
                pl.BlockSpec((block_b2, c, block_hw), lambda i, j: (i, 0, j)),
                pl.BlockSpec((block_b2, c, 1), lambda i, j: (i, 0, 0)),
            ],
            out_specs=pl.BlockSpec((block_b2, c, block_hw), lambda i, j: (i, 0, j)),
        ),
        compiler_params=pltpu.CompilerParams(
            dimension_semantics=("parallel", "parallel"),
            vmem_limit_bytes=vmem_limit_bytes),
    )(x, s)
    return out.reshape(b, c, h, w)


def se_reference(x_nchw, w1, w2):
    """Pure-JAX reference mirroring the PyTorch forward."""
    y = jnp.mean(x_nchw, axis=(2, 3))                 # (B, C)
    h = jnp.maximum(y @ w1, 0.0)                      # (B, Cr)
    s = jax.nn.sigmoid(h @ w2)                        # (B, C)
    return x_nchw * s[:, :, None, None]


if __name__ == "__main__":
    key = jax.random.PRNGKey(0)
    kx, k1, k2, kx2 = jax.random.split(key, 4)

    # Small shapes consistent with the module (channels divisible by reduction).
    B, C, H, W = 4, 64, 8, 8
    reduction = 16
    Cr = C // reduction

    x = jax.random.normal(kx, (B, C, H, W), dtype=jnp.float32)
    # nn.Linear(C, C//r, bias=False) / nn.Linear(C//r, C, bias=False) weights,
    # stored transposed so the kernel computes y @ w.
    w1 = jax.random.normal(k1, (C, Cr), dtype=jnp.float32) * 0.1
    w2 = jax.random.normal(k2, (Cr, C), dtype=jnp.float32) * 0.1

    out = se_layer(x, w1, w2)
    jax.block_until_ready(out)
    ref = se_reference(x, w1, w2)
    assert out.shape == (B, C, H, W)
    assert jnp.allclose(out, ref, atol=1e-5, rtol=1e-5)

    # Also exercise the two-pass fallback (pool+excite, then HW-tiled scale),
    # including a non-128-divisible HW that needs a masked boundary block.
    B2, C2, H2, W2 = 2, 32, 18, 18          # HW = 324 -> three 128-lane chunks
    Cr2 = C2 // reduction
    x2 = jax.random.normal(kx2, (B2, C2, H2, W2), dtype=jnp.float32)
    w1b = jax.random.normal(k1, (C2, Cr2), dtype=jnp.float32) * 0.1
    w2b = jax.random.normal(k2, (Cr2, C2), dtype=jnp.float32) * 0.1
    out2 = se_layer(x2, w1b, w2b, force_two_pass=True, hw_block=128)
    jax.block_until_ready(out2)
    ref2 = se_reference(x2, w1b, w2b)
    assert out2.shape == (B2, C2, H2, W2)
    assert jnp.allclose(out2, ref2, atol=1e-5, rtol=1e-5)

    print("KERNEL_OK")
</pallas_src>

<mosaic_0001>
module attributes {stable_mosaic.version = 11 : i64} {
  func.func @_se_fused_kernel(%arg0: i32, %arg1: memref<2x64x64xf32, #tpu.memory_space<vmem>>, %arg2: memref<64x4xf32, #tpu.memory_space<vmem>>, %arg3: memref<4x64xf32, #tpu.memory_space<vmem>>, %arg4: memref<2x64x64xf32, #tpu.memory_space<vmem>>) attributes {dimension_semantics = [#tpu.dimension_semantics<parallel>], iteration_bounds = array<i64: 2>, scalar_prefetch = 0 : i64, scratch_operands = 0 : i64, tpu.core_type = #tpu.core_type<tc>, window_params = [{transform_indices = @transform_0, window_bounds = array<i64: 2, 64, 64>}, {pipeline_mode = #tpu.pipeline_mode<synchronous>, transform_indices = @transform_1, window_bounds = array<i64: 64, 4>}, {pipeline_mode = #tpu.pipeline_mode<synchronous>, transform_indices = @transform_2, window_bounds = array<i64: 4, 64>}, {transform_indices = @transform_3, window_bounds = array<i64: 2, 64, 64>}]} {
    %c0 = arith.constant 0 : index
    %c0_0 = arith.constant 0 : index
    %c0_1 = arith.constant 0 : index
    %0 = vector.load %arg1[%c0, %c0_0, %c0_1] : memref<2x64x64xf32, #tpu.memory_space<vmem>>, vector<2x64x64xf32>
    %cst = arith.constant dense<0.000000e+00> : vector<2x64xf32>
    %1 = vector.multi_reduction <add>, %0, %cst [2] : vector<2x64x64xf32> to vector<2x64xf32>
    %cst_2 = arith.constant 1.562500e-02 : f32
    %2 = vector.broadcast %cst_2 : f32 to vector<2x64xf32>
    %3 = arith.mulf %1, %2 : vector<2x64xf32>
    %c0_3 = arith.constant 0 : index
    %c0_4 = arith.constant 0 : index
    %4 = vector.load %arg2[%c0_3, %c0_4] : memref<64x4xf32, #tpu.memory_space<vmem>>, vector<64x4xf32>
    %cst_5 = arith.constant dense<0.000000e+00> : vector<2x4xf32>
    %5 = tpu.matmul %3, %4, %cst_5 {dimension_numbers = #tpu.dot_dimension_numbers<[1], [0], [0], [1], [0, 0, 1, 1], [], []>} : vector<2x64xf32>, vector<64x4xf32>, vector<2x4xf32> -> vector<2x4xf32>
    %cst_6 = arith.constant 0.000000e+00 : f32
    %6 = vector.broadcast %cst_6 : f32 to vector<2x4xf32>
    %7 = arith.maximumf %5, %6 : vector<2x4xf32>
    %c0_7 = arith.constant 0 : index
    %c0_8 = arith.constant 0 : index
    %8 = vector.load %arg3[%c0_7, %c0_8] : memref<4x64xf32, #tpu.memory_space<vmem>>, vector<4x64xf32>
    %cst_9 = arith.constant dense<0.000000e+00> : vector<2x64xf32>
    %9 = tpu.matmul %7, %8, %cst_9 {dimension_numbers = #tpu.dot_dimension_numbers<[1], [0], [0], [1], [0, 0, 1, 1], [], []>} : vector<2x4xf32>, vector<4x64xf32>, vector<2x64xf32> -> vector<2x64xf32>
    %10 = arith.negf %9 : vector<2x64xf32>
    %11 = math.exp %10 : vector<2x64xf32>
    %cst_10 = arith.constant 1.000000e+00 : f32
    %12 = vector.broadcast %cst_10 : f32 to vector<2x64xf32>
    %13 = arith.addf %12, %11 : vector<2x64xf32>
    %14 = arith.divf %12, %13 : vector<2x64xf32>
    %15 = vector.shape_cast %14 : vector<2x64xf32> to vector<2x64x1xf32>
    %16 = vector.broadcast %15 : vector<2x64x1xf32> to vector<2x64x64xf32>
    %17 = arith.mulf %0, %16 : vector<2x64x64xf32>
    %c0_11 = arith.constant 0 : index
    %c0_12 = arith.constant 0 : index
    %c0_13 = arith.constant 0 : index
    %18 = vector.load %arg4[%c0_11, %c0_12, %c0_13] : memref<2x64x64xf32, #tpu.memory_space<vmem>>, vector<2x64x64xf32>
    tpu.vector_store %arg4[%c0_11, %c0_12, %c0_13], %17 {strides = array<i32>} : memref<2x64x64xf32, #tpu.memory_space<vmem>>, vector<2x64x64xf32>,
    return
  }
  func.func @transform_0(%arg0: i32) -> (i32, i32, i32) {
    %c0_i32 = arith.constant 0 : i32
    %c0_i32_0 = arith.constant 0 : i32
    %c0_i32_1 = arith.constant 0 : i32
    return %arg0, %c0_i32, %c0_i32_0 : i32, i32, i32
  }
  func.func @transform_1(%arg0: i32) -> (i32, i32) {
    %c0_i32 = arith.constant 0 : i32
    %c0_i32_0 = arith.constant 0 : i32
    %c0_i32_1 = arith.constant 0 : i32
    return %c0_i32, %c0_i32_0 : i32, i32
  }
  func.func @transform_2(%arg0: i32) -> (i32, i32) {
    %c0_i32 = arith.constant 0 : i32
    %c0_i32_0 = arith.constant 0 : i32
    %c0_i32_1 = arith.constant 0 : i32
    return %c0_i32, %c0_i32_0 : i32, i32
  }
  func.func @transform_3(%arg0: i32) -> (i32, i32, i32) {
    %c0_i32 = arith.constant 0 : i32
    %c0_i32_0 = arith.constant 0 : i32
    %c0_i32_1 = arith.constant 0 : i32
    return %arg0, %c0_i32, %c0_i32_0 : i32, i32, i32
  }
}

</mosaic_0001>

<llo_original>
// kernel: tpu_custom_call.1
$region0: #{tpu_custom_call.1}
  #allocation0 [shape = 'u32[]', space=smem, size = 0x4, offset = 0x4, fixed_abs, tag = 'smem constant byte address 0x4 - core index']
  #allocation1 [shape = 'u32[72,128]{1,0:T(1,128)}', space=vmem, size = 0x9000, scoped, tag = 'internal scratch']
  %s0 = inlined_call_operand.hbm [shape: f32[4,64,64], index: 0, kind: input, shape index: {}]
  %s1 = inlined_call_operand.vmem [shape: f32[64,4], index: 1, kind: input, shape index: {}]
  %s2 = inlined_call_operand.vmem [shape: f32[4,64], index: 2, kind: input, shape index: {}]
  %s3 = inlined_call_operand.hbm [shape: f32[4,64,64], index: 3, kind: output, shape index: {}]
  %s4 = sld [smem:[#allocation0]]
  $region49: #{tpu_custom_call.1} parent=0
    _
  %s6 = ssub.s32 1, %s4
  %s7 = scalar_select 0, %s6, %s4
  $region1: #{tpu_custom_call.1} parent=0
    #allocation2 [shape = 'u8[131072]{0}', space=vmem, size = 0x20000, scoped, tag = 'input window, operand 0']
    #allocation3 [shape = 's32[2]{0}', space=sflag, size = 0x8, scoped, tag = 'scoped memory for tpu_custom_call.1']
    #allocation4 [shape = 's32[2]{0}', space=sflag, size = 0x8, scoped, tag = 'scoped memory for tpu_custom_call.1']
    #allocation5 [shape = 'u8[131072]{0}', space=vmem, size = 0x20000, scoped, tag = 'output window, operand 0']
    %8 = vsyncpa [#allocation3], 0
    %s9 = scalar_lea.sflag [#allocation3], 1
    %10 = vsyncpa %s9, 0
    %11 = vsyncpa [#allocation4], 0
    %s12 = scalar_lea.sflag [#allocation4], 1
    %13 = vsyncpa %s12, 0
    loop: start=0, step=1, limit=4
    $region2: #{tpu_custom_call.1} parent=1 // loop_pre_header
      _
    $region3: #{tpu_custom_call.1} parent=1 // loop_header
      %s15 = sphi 0, %s19
      %p16 = scmp.ge.s32.totalorder %s15, 4
      %s25 = sphi 0, %s27
      %s28 = sphi 0, %s25
      %s29 = sphi 0, %s28
      %s45 = sphi 0, %s29
      %s49 = sphi 0, %s49
      %s51 = sphi 0, %s49
      %s52 = sphi 0, %s51
      %s66 = sphi 0, %s52
      %s70 = sphi 0, %s70
      %s72 = sphi 0, %s70
      %s73 = sphi 0, %s72
      %s87 = sphi 0, %s73
      %s93 = sphi 0, %s95
      %s96 = sphi 0, %s93
      %s97 = sphi 0, %s96
      %s113 = sphi 0, %s97
    $region4: #{tpu_custom_call.1} parent=1 // loop_header_branch
      %18 = sbr.rel (%p16) target = $region8
    $region5: #{tpu_custom_call.1} parent=1 // loop_body
      %s20 = ssub.s32 %s15, 1
      %s21 = ssub.s32 %s15, 2
      %s22 = sadd.s32 %s15, 1
      %s23 = ssub.s32 %s15, %s22
      %p24 = scmp.eq.s32.totalorder %s23, 0
      %s26 = sadd.s32 %s25, 1
      %s27 = scalar_select %p24, %s25, %s26
      %p30 = pneg %p24
      %p31 = scmp.eq.s32.totalorder %s15, 1
      %p32 = por %p30, %p31
      %p33 = scmp.ne.s32.totalorder %s25, %s28
      %p34 = scmp.eq.s32.totalorder %s15, 0
      %p35 = por %p33, %p34
      %p36 = scmp.ne.s32.totalorder %s25, %s28
      %p37 = scmp.eq.s32.totalorder %s20, 1
      %p38 = por %p36, %p37
      %p39 = scmp.ne.s32.totalorder %s28, %s29
      %p40 = scmp.eq.s32.totalorder %s20, 0
      %p41 = por %p39, %p40
      %p42 = scmp.ne.s32.totalorder %s28, %s29
      %p43 = scmp.eq.s32.totalorder %s21, 1
      %p44 = por %p42, %p43
      %p46 = scmp.ne.s32.totalorder %s29, %s45
      %p47 = scmp.eq.s32.totalorder %s21, 0
      %p48 = por %p46, %p47
      %s50 = sadd.s32 %s49, 1
      %p53 = scmp.eq.s32.totalorder %s15, 1
      %p54 = scmp.ne.s32.totalorder %s49, %s51
      %p55 = scmp.eq.s32.totalorder %s15, 0
      %p56 = por %p54, %p55
      %p57 = scmp.ne.s32.totalorder %s49, %s51
      %p58 = scmp.eq.s32.totalorder %s20, 1
      %p59 = por %p57, %p58
      %p60 = scmp.ne.s32.totalorder %s51, %s52
      %p61 = scmp.eq.s32.totalorder %s20, 0
      %p62 = por %p60, %p61
      %p63 = scmp.ne.s32.totalorder %s51, %s52
      %p64 = scmp.eq.s32.totalorder %s21, 1
      %p65 = por %p63, %p64
      %p67 = scmp.ne.s32.totalorder %s52, %s66
      %p68 = scmp.eq.s32.totalorder %s21, 0
      %p69 = por %p67, %p68
      %s71 = sadd.s32 %s70, 1
      %p74 = scmp.eq.s32.totalorder %s15, 1
      %p75 = scmp.ne.s32.totalorder %s70, %s72
      %p76 = scmp.eq.s32.totalorder %s15, 0
      %p77 = por %p75, %p76
      %p78 = scmp.ne.s32.totalorder %s70, %s72
      %p79 = scmp.eq.s32.totalorder %s20, 1
      %p80 = por %p78, %p79
      %p81 = scmp.ne.s32.totalorder %s72, %s73
      %p82 = scmp.eq.s32.totalorder %s20, 0
      %p83 = por %p81, %p82
      %p84 = scmp.ne.s32.totalorder %s72, %s73
      %p85 = scmp.eq.s32.totalorder %s21, 1
      %p86 = por %p84, %p85
      %p88 = scmp.ne.s32.totalorder %s73, %s87
      %p89 = scmp.eq.s32.totalorder %s21, 0
      %p90 = por %p88, %p89
      %s91 = ssub.s32 %s15, %s22
      %p92 = scmp.eq.s32.totalorder %s91, 0
      %s94 = sadd.s32 %s93, 1
      %s95 = scalar_select %p92, %s93, %s94
      %p98 = pneg %p92
      %p99 = scmp.eq.s32.totalorder %s15, 1
      %p100 = por %p98, %p99
      %p101 = scmp.ne.s32.totalorder %s93, %s96
      %p102 = scmp.eq.s32.totalorder %s15, 0
      %p103 = por %p101, %p102
      %p104 = scmp.ne.s32.totalorder %s93, %s96
      %p105 = scmp.eq.s32.totalorder %s20, 1
      %p106 = por %p104, %p105
      %p107 = scmp.ne.s32.totalorder %s96, %s97
      %p108 = scmp.eq.s32.totalorder %s20, 0
      %p109 = por %p107, %p108
      %p110 = scmp.ne.s32.totalorder %s96, %s97
      %p111 = scmp.eq.s32.totalorder %s21, 1
      %p112 = por %p110, %p111
      %p114 = scmp.ne.s32.totalorder %s97, %s113
      %p115 = scmp.eq.s32.totalorder %s21, 0
      %p116 = por %p114, %p115
      %p117 = scmp.le.s32.totalorder 1, %s15
      %p118 = scmp.lt.s32.totalorder %s15, 3
      %p119 = pnand %p117, %p118
      %p120 = pneg %p119
      // Predicated region
      $region9: #{tpu_custom_call.1} parent=5 // pred_check
        _
      $region10: #{tpu_custom_call.1} parent=5 // pred_check_branch
        %122 = sbr.rel (%p119) target = $region12
      $region11: #{tpu_custom_call.1} parent=5 // pred_region
        %s123 = ssub.s32 %s15, 1
        // Predicated region
        $region13: #{tpu_custom_call.1} parent=11 // pred_check
          %p124 = pneg %p62
        $region14: #{tpu_custom_call.1} parent=11 // pred_check_branch
          %126 = sbr.rel (%p124) target = $region16
        $region15: #{tpu_custom_call.1} parent=11 // pred_region
          _
        $region16: #{tpu_custom_call.1} parent=11 // pred_fallthru
          _
        // Predicated region
        $region17: #{tpu_custom_call.1} parent=11 // pred_check
          %p127 = pneg %p83
        $region18: #{tpu_custom_call.1} parent=11 // pred_check_branch
          %129 = sbr.rel (%p127) target = $region20
        $region19: #{tpu_custom_call.1} parent=11 // pred_region
          _
        $region20: #{tpu_custom_call.1} parent=11 // pred_fallthru
          _
      $region12: #{tpu_custom_call.1} parent=5 // pred_fallthru
        _
      %p130 = scmp.lt.s32.totalorder %s15, 2
      // Predicated region
      $region21: #{tpu_custom_call.1} parent=5 // pred_check
        %p131 = pneg %p130
      $region22: #{tpu_custom_call.1} parent=5 // pred_check_branch
        %133 = sbr.rel (%p131) target = $region24
      $region23: #{tpu_custom_call.1} parent=5 // pred_region
        // Predicated region
        $region25: #{tpu_custom_call.1} parent=23 // pred_check
          %p134 = pneg %p35
        $region26: #{tpu_custom_call.1} parent=23 // pred_check_branch
          %136 = sbr.rel (%p134) target = $region28
        $region27: #{tpu_custom_call.1} parent=23 // pred_region
          %s137 = sand.u32 %s25, 1
          %s138 = scalar_lea.sflag [#allocation3], %s137
          %s139 = sand.u32 %s25, 1
          %s140 = smul.addr %s139, 128
          %s141 = scalar_lea.vmem [#allocation2], %s140
          %s142 = smul.u32 2, %s15
          %144 = vsyncadd %s138, 0
          %s145 = smul.addr %s142, 8
          %s146 = smul.addr %s145, 8
          %s147 = scalar_lea.hbm %s0, %s146
          %s148 = sshll.u32 %s147, 4
          %s149 = int_to_ptr.hbm [resolvable:$true] %s148
          %s150 = sshll.u32 %s141, 4
          %s151 = int_to_ptr.vmem [resolvable:$true] %s150
          %156 = dma.hbm_to_vmem [thread:$0]  %s149, 2048, %s151, %s138, 128, 128, 8
        $region28: #{tpu_custom_call.1} parent=23 // pred_fallthru
          _
      $region24: #{tpu_custom_call.1} parent=5 // pred_fallthru
        _
      %p157 = scmp.le.s32.totalorder 1, %s15
      %p158 = scmp.lt.s32.totalorder %s15, 3
      %p159 = pnand %p157, %p158
      %p160 = pneg %p159
      // Predicated region
      $region29: #{tpu_custom_call.1} parent=5 // pred_check
        _
      $region30: #{tpu_custom_call.1} parent=5 // pred_check_branch
        %162 = sbr.rel (%p159) target = $region32
      $region31: #{tpu_custom_call.1} parent=5 // pred_region
        %s163 = ssub.s32 %s15, 1
        %s164 = sand.u32 %s28, 1
        %s165 = scalar_lea.sflag [#allocation3], %s164
        %s166 = sand.u32 %s28, 1
        %s167 = smul.addr %s166, 128
        %s168 = scalar_lea.vmem [#allocation2], %s167
        // Predicated region
        $region33: #{tpu_custom_call.1} parent=31 // pred_check
          %p169 = pneg %p41
        $region34: #{tpu_custom_call.1} parent=31 // pred_check_branch
          %171 = sbr.rel (%p169) target = $region36
        $region35: #{tpu_custom_call.1} parent=31 // pred_region
          %173 = dma.done %s165, 2048
        $region36: #{tpu_custom_call.1} parent=31 // pred_fallthru
          _
        %s174 = sand.u32 %s28, 1
        %s175 = scalar_lea.sflag [#allocation3], %s174
        %s176 = sand.u32 %s28, 1
        %s177 = smul.addr %s176, 128
        %s178 = scalar_lea.vmem [#allocation2], %s177
        %p179 = pneg %p41
        %p180 = pneg %p38
        %p181 = pneg %p62
        %p182 = pneg %p59
        %p183 = pneg %p83
        %p184 = pneg %p80
        %p185 = pneg %p109
        %p186 = pneg %p106
        %s187 = sand.u32 %s96, 1
        %s188 = scalar_lea.sflag [#allocation4], %s187
        %s189 = sand.u32 %s96, 1
        %s190 = smul.addr %s189, 128
        %s191 = scalar_lea.vmem [#allocation5], %s190
        %s192 = smul.u32 2, %s20
        %s193 = smul.u32 2, %s20
        %v194 = vld [vmem:[%s168] sm:$0xff]
        %v195 = vld [vmem:[%s168 + $0x8] sm:$0xff]
        %v196 = vld [vmem:[%s168 + $0x10] sm:$0xff]
        %v197 = vld [vmem:[%s168 + $0x18] sm:$0xff]
        %v198 = vld [vmem:[%s168 + $0x20] sm:$0xff]
        %v199 = vld [vmem:[%s168 + $0x28] sm:$0xff]
        %v200 = vld [vmem:[%s168 + $0x30] sm:$0xff]
        %v201 = vld [vmem:[%s168 + $0x38] sm:$0xff]
        %v202 = vld [vmem:[%s168 + $0x40] sm:$0xff]
        %v203 = vld [vmem:[%s168 + $0x48] sm:$0xff]
        %v204 = vld [vmem:[%s168 + $0x50] sm:$0xff]
        %v205 = vld [vmem:[%s168 + $0x58] sm:$0xff]
        %v206 = vld [vmem:[%s168 + $0x60] sm:$0xff]
        %v207 = vld [vmem:[%s168 + $0x68] sm:$0xff]
        %v208 = vld [vmem:[%s168 + $0x70] sm:$0xff]
        %v209 = vld [vmem:[%s168 + $0x78] sm:$0xff]
        %vm210 = vcmask 523264
        %v211 = vsel %vm210, %v194, 0.0
        %212 = vadd.xlane.f32.xlu0 %v211
        %v213 = vpop.xlane.xlu0 %212
        %v214 = vsel %vm210, %v195, 0.0
        %215 = vadd.xlane.f32.xlu0 %v214
        %v216 = vpop.xlane.xlu0 %215
        %v217 = vsel %vm210, %v196, 0.0
        %218 = vadd.xlane.f32.xlu0 %v217
        %v219 = vpop.xlane.xlu0 %218
        %v220 = vsel %vm210, %v197, 0.0
        %221 = vadd.xlane.f32.xlu0 %v220
        %v222 = vpop.xlane.xlu0 %221
        %v223 = vsel %vm210, %v198, 0.0
        %224 = vadd.xlane.f32.xlu0 %v223
        %v225 = vpop.xlane.xlu0 %224
        %v226 = vsel %vm210, %v199, 0.0
        %227 = vadd.xlane.f32.xlu0 %v226
        %v228 = vpop.xlane.xlu0 %227
        %v229 = vsel %vm210, %v200, 0.0
        %230 = vadd.xlane.f32.xlu0 %v229
        %v231 = vpop.xlane.xlu0 %230
        %v232 = vsel %vm210, %v201, 0.0
        %233 = vadd.xlane.f32.xlu0 %v232
        %v234 = vpop.xlane.xlu0 %233
        %v235 = vsel %vm210, %v202, 0.0
        %236 = vadd.xlane.f32.xlu0 %v235
        %v237 = vpop.xlane.xlu0 %236
        %v238 = vsel %vm210, %v203, 0.0
        %239 = vadd.xlane.f32.xlu0 %v238
        %v240 = vpop.xlane.xlu0 %239
        %v241 = vsel %vm210, %v204, 0.0
        %242 = vadd.xlane.f32.xlu0 %v241
        %v243 = vpop.xlane.xlu0 %242
        %v244 = vsel %vm210, %v205, 0.0
        %245 = vadd.xlane.f32.xlu0 %v244
        %v246 = vpop.xlane.xlu0 %245
        %v247 = vsel %vm210, %v206, 0.0
        %248 = vadd.xlane.f32.xlu0 %v247
        %v249 = vpop.xlane.xlu0 %248
        %v250 = vsel %vm210, %v207, 0.0
        %251 = vadd.xlane.f32.xlu0 %v250
        %v252 = vpop.xlane.xlu0 %251
        %v253 = vsel %vm210, %v208, 0.0
        %254 = vadd.xlane.f32.xlu0 %v253
        %v255 = vpop.xlane.xlu0 %254
        %v256 = vsel %vm210, %v209, 0.0
        %257 = vadd.xlane.f32.xlu0 %v256
        %v258 = vpop.xlane.xlu0 %257
        %v259 = vmul.f32 %v213, 0.015625
        %v260 = vmul.f32 %v216, 0.015625
        %v261 = vmul.f32 %v219, 0.015625
        %v262 = vmul.f32 %v222, 0.015625
        %v263 = vmul.f32 %v225, 0.015625
        %v264 = vmul.f32 %v228, 0.015625
        %v265 = vmul.f32 %v231, 0.015625
        %v266 = vmul.f32 %v234, 0.015625
        %v267 = vmul.f32 %v237, 0.015625
        %v268 = vmul.f32 %v240, 0.015625
        %v269 = vmul.f32 %v243, 0.015625
        %v270 = vmul.f32 %v246, 0.015625
        %v271 = vmul.f32 %v249, 0.015625
        %v272 = vmul.f32 %v252, 0.015625
        %v273 = vmul.f32 %v255, 0.015625
        %v274 = vmul.f32 %v258, 0.015625
        %v275 = vld [vmem:[%s1] sm:$0xff]
        %v276 = vld [vmem:[%s1 + $0x8] sm:$0xff]
        %v277 = vld [vmem:[%s1 + $0x10] sm:$0xff]
        %v278 = vld [vmem:[%s1 + $0x18] sm:$0xff]
        %v279 = vld [vmem:[%s1 + $0x20] sm:$0xff]
        %v280 = vld [vmem:[%s1 + $0x28] sm:$0xff]
        %v281 = vld [vmem:[%s1 + $0x30] sm:$0xff]
        %v282 = vld [vmem:[%s1 + $0x38] sm:$0xff]
        %v299 = vlaneseq
        %v300 = vand.u32 %v299, 127
        %v301 = vperm.slane %v259, %v300
        %v302 = vadd.s32 %v300, 4294967288
        %v303 = vperm.slane %v260, %v302
        %vm304 = vcmask 130112
        %v305 = vsel %vm304, %v303, %v301
        %v306 = vadd.s32 %v300, 4294967280
        %v307 = vperm.slane %v261, %v306
        %vm308 = vcmask 195712
        %v309 = vsel %vm308, %v307, %v305
        %v310 = vadd.s32 %v300, 4294967272
        %v311 = vperm.slane %v262, %v310
        %vm312 = vcmask 261312
        %v313 = vsel %vm312, %v311, %v309
        %v314 = vadd.s32 %v300, 4294967264
        %v315 = vperm.slane %v263, %v314
        %vm316 = vcmask 326912
        %v317 = vsel %vm316, %v315, %v313
        %v318 = vadd.s32 %v300, 4294967256
        %v319 = vperm.slane %v264, %v318
        %vm320 = vcmask 392512
        %v321 = vsel %vm320, %v319, %v317
        %v322 = vadd.s32 %v300, 4294967248
        %v323 = vperm.slane %v265, %v322
        %vm324 = vcmask 458112
        %v325 = vsel %vm324, %v323, %v321
        %v326 = vadd.s32 %v300, 4294967240
        %v327 = vperm.slane %v266, %v326
        %vm328 = vcmask 523712
        %v329 = vsel %vm328, %v327, %v325
        %v330 = vperm.slane %v267, %v300
        %v331 = vperm.slane %v268, %v302
        %v332 = vsel %vm304, %v331, %v330
        %v333 = vperm.slane %v269, %v306
        %v334 = vsel %vm308, %v333, %v332
        %v335 = vperm.slane %v270, %v310
        %v336 = vsel %vm312, %v335, %v334
        %v337 = vperm.slane %v271, %v314
        %v338 = vsel %vm316, %v337, %v336
        %v339 = vperm.slane %v272, %v318
        %v340 = vsel %vm320, %v339, %v338
        %v341 = vperm.slane %v273, %v322
        %v342 = vsel %vm324, %v341, %v340
        %v343 = vperm.slane %v274, %v326
        %v344 = vsel %vm328, %v343, %v342
        %vm345 = vcmask 1041409
        %v346 = vsel %vm345, %v344, %v329
        %v347 = vsel %vm210, %v346, 0
        %349 = vmatpush.msra.mxu0 0.0
        %350 = vmatpush.msra.mxu0 0.0
        %351 = vmatpush.msra.mxu0 0.0
        %352 = vmatpush.msra.mxu0 0.0
        %353 = vmatpush.msra.mxu0 0.0
        %354 = vmatpush.msra.mxu0 0.0
        %355 = vmatpush.msra.mxu0 0.0
        %356 = vmatpush.msra.mxu0 0.0
        %357 = vmatpush.msra.mxu0 %v282
        %358 = vmatpush.msra.mxu0 %v281
        %359 = vmatpush.msra.mxu0 %v280
        %360 = vmatpush.msra.mxu0 %v279
        %361 = vmatpush.msra.mxu0 %v278
        %362 = vmatpush.msra.mxu0 %v277
        %363 = vmatpush.msra.mxu0 %v276
        %364 = vmatpush.msra.mxu0 %v275
        %365 = vmatmul.f32.gmra.mxu0 %v347
        %v366 = vpop.f32.mrf.mxu0
        %v367 = vadd.f32 0.0, %v366
        %368 = vdwg.mxu0
        %v369 = vmax.f32 %v367, 0.0
        %v370 = vld [vmem:[%s2] sm:$0xf]
        %vm371 = vcmask 31744
        %v373 = vsel %vm371, %v369, 0
        %vm375 = vcmask 1043456
        %v377 = vsel %vm375, %v370, 0
        %379 = vmatpush.msra.mxu0 0.0
        %380 = vmatpush.msra.mxu0 0.0
        %381 = vmatpush.msra.mxu0 0.0
        %382 = vmatpush.msra.mxu0 0.0
        %383 = vmatpush.msra.mxu0 0.0
        %384 = vmatpush.msra.mxu0 0.0
        %385 = vmatpush.msra.mxu0 0.0
        %386 = vmatpush.msra.mxu0 0.0
        %387 = vmatpush.msra.mxu0 0.0
        %388 = vmatpush.msra.mxu0 0.0
        %389 = vmatpush.msra.mxu0 0.0
        %390 = vmatpush.msra.mxu0 0.0
        %391 = vmatpush.msra.mxu0 0.0
        %392 = vmatpush.msra.mxu0 0.0
        %393 = vmatpush.msra.mxu0 0.0
        %394 = vmatpush.msra.mxu0 %v377
        %395 = vmatmul.f32.gmra.mxu0 %v373
        %v396 = vpop.f32.mrf.mxu0
        %v397 = vadd.f32 0.0, %v396
        %398 = vdwg.mxu0
        %v399 = vxor.u32 %v397, 2147483648
        %v400 = vmul.f32 %v399, 1.442695
        %v401 = vpow.pop %v400
        %v402 = vadd.f32 %v401, 1.0
        %v403 = vrcp.pop %v402
        %v404 = vmul.f32 %v402, %v403
        %v405 = vsub.f32 1.0, %v404
        %v406 = vmul.f32 %v403, %v405
        %v407 = vadd.f32 %v403, %v406
        %vm408 = vweird.f32 %v402
        %vm409 = vweird.f32 %v403
        %vm410 = vmor %vm408, %vm409
        %v411 = vsel %vm410, %v403, %v407
        %v412 = vand.u32 2147483647, %v402
        %vm413 = vcmp.eq.f32.partialorder %v412, 8.507059e+37
        %v414 = vand.u32 %v402, 2147483648
        %v415 = vor.u32 1.1754944e-38, %v414
        %v416 = vsel %vm413, %v415, %v411
        %v417 = vmul.f32 1.0, %v416
        %v418 = vperm.slane %v417, 0
        %v419 = vlaneseq
        %v420 = vshrl.u32 %v419, 7
        %422 = vset.pattern.permute.xlu0 %v420
        %423 = vperm.xlu0 %422, %v418
        %v424 = vpop.permute.xlu0 %423
        %v425 = vlaneseq
        %v426 = vshrl.u32 %v425, 7
        %v427 = vadd.s32 %v426, 8
        %428 = vset.pattern.permute.xlu0 %v427
        %429 = vperm.xlu0 %428, %v418
        %v430 = vpop.permute.xlu0 %429
        %v431 = vlaneseq
        %v432 = vshrl.u32 %v431, 7
        %v433 = vadd.s32 %v432, 16
        %434 = vset.pattern.permute.xlu0 %v433
        %435 = vperm.xlu0 %434, %v418
        %v436 = vpop.permute.xlu0 %435
        %v437 = vlaneseq
        %v438 = vshrl.u32 %v437, 7
        %v439 = vadd.s32 %v438, 24
        %440 = vset.pattern.permute.xlu0 %v439
        %441 = vperm.xlu0 %440, %v418
        %v442 = vpop.permute.xlu0 %441
        %v443 = vlaneseq
        %v444 = vshrl.u32 %v443, 7
        %v445 = vadd.s32 %v444, 32
        %446 = vset.pattern.permute.xlu0 %v445
        %447 = vperm.xlu0 %446, %v418
        %v448 = vpop.permute.xlu0 %447
        %v449 = vlaneseq
        %v450 = vshrl.u32 %v449, 7
        %v451 = vadd.s32 %v450, 40
        %452 = vset.pattern.permute.xlu0 %v451
        %453 = vperm.xlu0 %452, %v418
        %v454 = vpop.permute.xlu0 %453
        %v455 = vlaneseq
        %v456 = vshrl.u32 %v455, 7
        %v457 = vadd.s32 %v456, 48
        %458 = vset.pattern.permute.xlu0 %v457
        %459 = vperm.xlu0 %458, %v418
        %v460 = vpop.permute.xlu0 %459
        %v461 = vlaneseq
        %v462 = vshrl.u32 %v461, 7
        %v463 = vadd.s32 %v462, 56
        %464 = vset.pattern.permute.xlu0 %v463
        %465 = vperm.xlu0 %464, %v418
        %v466 = vpop.permute.xlu0 %465
        %v467 = vperm.slane %v417, 1
        %v468 = vlaneseq
        %v469 = vshrl.u32 %v468, 7
        %471 = vset.pattern.permute.xlu0 %v469
        %472 = vperm.xlu0 %471, %v467
        %v473 = vpop.permute.xlu0 %472
        %v474 = vlaneseq
        %v475 = vshrl.u32 %v474, 7
        %v476 = vadd.s32 %v475, 8
        %477 = vset.pattern.permute.xlu0 %v476
        %478 = vperm.xlu0 %477, %v467
        %v479 = vpop.permute.xlu0 %478
        %v480 = vlaneseq
        %v481 = vshrl.u32 %v480, 7
        %v482 = vadd.s32 %v481, 16
        %483 = vset.pattern.permute.xlu0 %v482
        %484 = vperm.xlu0 %483, %v467
        %v485 = vpop.permute.xlu0 %484
        %v486 = vlaneseq
        %v487 = vshrl.u32 %v486, 7
        %v488 = vadd.s32 %v487, 24
        %489 = vset.pattern.permute.xlu0 %v488
        %490 = vperm.xlu0 %489, %v467
        %v491 = vpop.permute.xlu0 %490
        %v492 = vlaneseq
        %v493 = vshrl.u32 %v492, 7
        %v494 = vadd.s32 %v493, 32
        %495 = vset.pattern.permute.xlu0 %v494
        %496 = vperm.xlu0 %495, %v467
        %v497 = vpop.permute.xlu0 %496
        %v498 = vlaneseq
        %v499 = vshrl.u32 %v498, 7
        %v500 = vadd.s32 %v499, 40
        %501 = vset.pattern.permute.xlu0 %v500
        %502 = vperm.xlu0 %501, %v467
        %v503 = vpop.permute.xlu0 %502
        %v504 = vlaneseq
        %v505 = vshrl.u32 %v504, 7
        %v506 = vadd.s32 %v505, 48
        %507 = vset.pattern.permute.xlu0 %v506
        %508 = vperm.xlu0 %507, %v467
        %v509 = vpop.permute.xlu0 %508
        %v510 = vlaneseq
        %v511 = vshrl.u32 %v510, 7
        %v512 = vadd.s32 %v511, 56
        %513 = vset.pattern.permute.xlu0 %v512
        %514 = vperm.xlu0 %513, %v467
        %v515 = vpop.permute.xlu0 %514
        %v516 = vmul.f32 %v194, %v424
        %v517 = vmul.f32 %v195, %v430
        %v518 = vmul.f32 %v196, %v436
        %v519 = vmul.f32 %v197, %v442
        %v520 = vmul.f32 %v198, %v448
        %v521 = vmul.f32 %v199, %v454
        %v522 = vmul.f32 %v200, %v460
        %v523 = vmul.f32 %v201, %v466
        %v524 = vmul.f32 %v202, %v473
        %v525 = vmul.f32 %v203, %v479
        %v526 = vmul.f32 %v204, %v485
        %v527 = vmul.f32 %v205, %v491
        %v528 = vmul.f32 %v206, %v497
        %v529 = vmul.f32 %v207, %v503
        %v530 = vmul.f32 %v208, %v509
        %v531 = vmul.f32 %v209, %v515
        %532 = vst.msk [vmem:[%s191] sm:$0xff] %vm210, %v516
        %533 = vst.msk [vmem:[%s191 + $0x8] sm:$0xff] %vm210, %v517
        %534 = vst.msk [vmem:[%s191 + $0x10] sm:$0xff] %vm210, %v518
        %535 = vst.msk [vmem:[%s191 + $0x18] sm:$0xff] %vm210, %v519
        %536 = vst.msk [vmem:[%s191 + $0x20] sm:$0xff] %vm210, %v520
        %537 = vst.msk [vmem:[%s191 + $0x28] sm:$0xff] %vm210, %v521
        %538 = vst.msk [vmem:[%s191 + $0x30] sm:$0xff] %vm210, %v522
        %539 = vst.msk [vmem:[%s191 + $0x38] sm:$0xff] %vm210, %v523
        %540 = vst.msk [vmem:[%s191 + $0x40] sm:$0xff] %vm210, %v524
        %541 = vst.msk [vmem:[%s191 + $0x48] sm:$0xff] %vm210, %v525
        %542 = vst.msk [vmem:[%s191 + $0x50] sm:$0xff] %vm210, %v526
        %543 = vst.msk [vmem:[%s191 + $0x58] sm:$0xff] %vm210, %v527
        %544 = vst.msk [vmem:[%s191 + $0x60] sm:$0xff] %vm210, %v528
        %545 = vst.msk [vmem:[%s191 + $0x68] sm:$0xff] %vm210, %v529
        %546 = vst.msk [vmem:[%s191 + $0x70] sm:$0xff] %vm210, %v530
        %547 = vst.msk [vmem:[%s191 + $0x78] sm:$0xff] %vm210, %v531
        %s548 = sand.u32 %s96, 1
        %s549 = scalar_lea.sflag [#allocation4], %s548
        %s550 = sand.u32 %s96, 1
        %s551 = smul.addr %s550, 128
        %s552 = scalar_lea.vmem [#allocation5], %s551
        // Predicated region
        $region37: #{tpu_custom_call.1} parent=31 // pred_check
          %p553 = pneg %p106
        $region38: #{tpu_custom_call.1} parent=31 // pred_check_branch
          %555 = sbr.rel (%p553) target = $region40
        $region39: #{tpu_custom_call.1} parent=31 // pred_region
          %s556 = smul.u32 2, %s20
          %558 = vsyncadd %s549, 0
          %s559 = smul.addr %s556, 8
          %s560 = smul.addr %s559, 8
          %s561 = scalar_lea.hbm %s3, %s560
          %s562 = sshll.u32 %s552, 4
          %s563 = int_to_ptr.vmem [resolvable:$true] %s562
          %s564 = sshll.u32 %s561, 4
          %s565 = int_to_ptr.hbm [resolvable:$true] %s564
          %570 = dma.vmem_to_hbm [thread:$0]  %s563, 2048, %s565, %s549, 128, 128, 8
        $region40: #{tpu_custom_call.1} parent=31 // pred_fallthru
          _
      $region32: #{tpu_custom_call.1} parent=5 // pred_fallthru
        _
      %p571 = scmp.le.s32.totalorder 2, %s15
      // Predicated region
      $region41: #{tpu_custom_call.1} parent=5 // pred_check
        %p572 = pneg %p571
      $region42: #{tpu_custom_call.1} parent=5 // pred_check_branch
        %574 = sbr.rel (%p572) target = $region44
      $region43: #{tpu_custom_call.1} parent=5 // pred_region
        %s575 = ssub.s32 %s15, 2
        // Predicated region
        $region45: #{tpu_custom_call.1} parent=43 // pred_check
          %p576 = pneg %p112
        $region46: #{tpu_custom_call.1} parent=43 // pred_check_branch
          %578 = sbr.rel (%p576) target = $region48
        $region47: #{tpu_custom_call.1} parent=43 // pred_region
          %s579 = sand.u32 %s97, 1
          %s580 = scalar_lea.sflag [#allocation4], %s579
          %s581 = sand.u32 %s97, 1
          %s582 = smul.addr %s581, 128
          %s583 = scalar_lea.vmem [#allocation5], %s582
          %585 = dma.done %s580, 2048
        $region48: #{tpu_custom_call.1} parent=43 // pred_fallthru
          _
      $region44: #{tpu_custom_call.1} parent=5 // pred_fallthru
        _
    $region6: #{tpu_custom_call.1} parent=1 // loop_footer
      %s19 = sadd.s32 1, %s15
    $region7: #{tpu_custom_call.1} parent=1 // loop_footer_branch
      %14 = sbr.rel target = $region3
    $region8: #{tpu_custom_call.1} parent=1 // loop_exit
      _
    %586 = vsyncpa [#allocation3], 1
    %s587 = scalar_lea.sflag [#allocation3], 1
    %588 = vsyncpa %s587, 1
    %589 = vsyncpa [#allocation4], 1
    %s590 = scalar_lea.sflag [#allocation4], 1
    %591 = vsyncpa %s590, 1

</llo_original>
